<compile_context>
chip_gen: v6e
topology: v6e:2x2x1
jax: 0.10.0
libtpu: 0.0.40
codegen_flags: <defaults>
</compile_context>

<pallas_src>
import functools
import math

import jax
import jax.numpy as jnp
import numpy as np
from jax.experimental import pallas as pl
from jax.experimental.pallas import tpu as pltpu

# ----- ArcFace hyper-parameters (deterministic, in lieu of cfg) --------------
SCALE = 30.0
MARGIN = 0.50
COS_M = math.cos(MARGIN)
SIN_M = math.sin(MARGIN)
THRESHOLD = math.cos(math.pi - MARGIN)
MM = math.sin(math.pi - MARGIN) * MARGIN
EPS = 1e-12  # F.normalize default eps


def _round_up(x, m):
    return ((x + m - 1) // m) * m


# ----------------------------- Pallas kernel ---------------------------------
def _arcface_tile_kernel(n_class_tiles,
                         flags_ref,   # SMEM (nI*nJ,) i32 (scalar prefetch)
                         f_ref,       # VMEM (TB, Dp)  compute dtype (bf16)
                         w_ref,       # VMEM (TC, Dp)  compute dtype (bf16)
                         cosm_ref,    # VMEM (TB, 1)   f32  cos(theta_t + m)
                         ftl_ref,     # VMEM (TB, 1)   f32  final_target_logit * SCALE
                         tgt_ref,     # VMEM (TB, 1)   i32  target class id
                         t_ref,       # SMEM (1, 1)    f32  updated running buffer t
                         out_ref):    # VMEM (TB, TC)  f32  logits tile
    i = pl.program_id(0)
    j = pl.program_id(1)

    # cos_theta tile: (TB, D) x (TC, D) contracting on D -> (TB, TC), f32 acc.
    cos = jax.lax.dot_general(
        f_ref[...], w_ref[...],
        dimension_numbers=(((1,), (1,)), ((), ())),
        preferred_element_type=jnp.float32)
    cos = jnp.clip(cos, -1.0, 1.0)

    t = t_ref[0, 0]
    scaled = cos * SCALE                    # s * cos_theta
    hard = scaled * (t + cos)               # s * cos_theta * (t + cos_theta)
    out_ref[...] = jnp.where(cos > cosm_ref[...], hard, scaled)

    # Scatter of final_target_logit: only for class tiles holding some target.
    @pl.when(flags_ref[i * n_class_tiles + j] > 0)
    def _():
        tb, tc = out_ref.shape
        col = jax.lax.broadcasted_iota(jnp.int32, (tb, tc), 1) + j * tc
        onehot = col == tgt_ref[...]
        out_ref[...] = jnp.where(onehot, ftl_ref[...], out_ref[...])


# ------------------------------- pre-pass -------------------------------------
def _arcface_prepass(features, weight, targets, t, compute_dtype):
    """O(B*D) part: normalisation, target logit, margin terms, `t` update."""
    features = features.astype(jnp.float32)
    weight = weight.astype(jnp.float32)

    # F.normalize(x, dim=1) = x / max(||x||, eps) = x * rsqrt(max(||x||^2, eps^2))
    f_n = features * jax.lax.rsqrt(
        jnp.maximum(jnp.sum(features * features, axis=-1, keepdims=True), EPS * EPS))
    w_n = weight * jax.lax.rsqrt(
        jnp.maximum(jnp.sum(weight * weight, axis=-1, keepdims=True), EPS * EPS))

    f_c = f_n.astype(compute_dtype)
    w_c = w_n.astype(compute_dtype)

    # target_logit_i = <f_n_i, w_n[target_i]> using the same rounded operands
    # the tiled GEMM sees (f32 accumulation).
    w_tgt = w_c[targets.astype(jnp.int32)]
    target_logit = jnp.sum(
        f_c.astype(jnp.float32) * w_tgt.astype(jnp.float32), axis=-1, keepdims=True)
    target_logit = jnp.clip(target_logit, -1.0, 1.0)

    sin_theta = jnp.sqrt(1.0 - target_logit * target_logit)
    cos_theta_m = target_logit * COS_M - sin_theta * SIN_M
    final_target = jnp.where(target_logit > THRESHOLD, cos_theta_m, target_logit - MM)

    # running buffer: t <- mean(target_logit)*0.01 + 0.99*t  (updated BEFORE the
    # hard-example rescale, matching the PyTorch forward).
    t_new = jnp.mean(target_logit) * 0.01 + (1.0 - 0.01) * t.reshape(-1)[0]

    return f_c, w_c, cos_theta_m, final_target * SCALE, t_new


# -------------------------------- wrapper -------------------------------------
def arcface_forward(features, weight, targets, t, *,
                    block_b=256, block_c=512, compute_dtype=jnp.bfloat16):
    """features: (B, D) f32, weight: (C, D) f32, targets: (B,) int, t: (1,) f32.

    Returns (pred_class_logits (B, C) f32, updated `t` buffer (1,) f32).
    """
    B, D = features.shape
    C, _ = weight.shape
    assert block_b % 8 == 0 and block_c % 128 == 0

    f_c, w_c, cos_theta_m, ftl_scaled, t_new = _arcface_prepass(
        features, weight, targets, t, compute_dtype)

    # --- tile sizes & padding ((8,128)-aligned, lane-dense logits tiles) ------
    TB = min(block_b, _round_up(B, 8))
    TC = min(block_c, _round_up(C, 128))
    Bp = _round_up(B, TB)
    Cp = _round_up(C, TC)
    Dp = _round_up(D, 128)

    f_p = jnp.pad(f_c, ((0, Bp - B), (0, Dp - D)))
    w_p = jnp.pad(w_c, ((0, Cp - C), (0, Dp - D)))
    cosm_p = jnp.pad(cos_theta_m, ((0, Bp - B), (0, 0)), constant_values=2.0)
    ftl_p = jnp.pad(ftl_scaled, ((0, Bp - B), (0, 0)))
    tgt_p = jnp.pad(targets.astype(jnp.int32), (0, Bp - B), constant_values=-1)

    n_i, n_j = Bp // TB, Cp // TC

    # per (row-tile, class-tile) flag: does this class tile hold any row's target?
    valid = tgt_p >= 0
    flags2d = jnp.zeros((n_i, n_j), jnp.int32).at[
        jnp.arange(Bp) // TB, jnp.where(valid, tgt_p // TC, 0)
    ].add(valid.astype(jnp.int32))
    flags = (flags2d > 0).astype(jnp.int32).reshape(-1)   # 1-D: cheap in SMEM

    kernel = functools.partial(_arcface_tile_kernel, n_j)

    grid_spec = pltpu.PrefetchScalarGridSpec(
        num_scalar_prefetch=1,
        grid=(n_i, n_j),
        in_specs=[
            pl.BlockSpec((TB, Dp), lambda i, j, flags: (i, 0)),   # features (resident over j)
            pl.BlockSpec((TC, Dp), lambda i, j, flags: (j, 0)),   # weight (streamed)
            pl.BlockSpec((TB, 1), lambda i, j, flags: (i, 0)),    # cos(theta_t + m)
            pl.BlockSpec((TB, 1), lambda i, j, flags: (i, 0)),    # final_target_logit * s
            pl.BlockSpec((TB, 1), lambda i, j, flags: (i, 0)),    # targets
            pl.BlockSpec(memory_space=pltpu.MemorySpace.SMEM),    # t_new scalar
        ],
        out_specs=pl.BlockSpec((TB, TC), lambda i, j, flags: (i, j)),
    )

    logits_p = pl.pallas_call(
        kernel,
        out_shape=jax.ShapeDtypeStruct((Bp, Cp), jnp.float32),
        grid_spec=grid_spec,
        compiler_params=pltpu.CompilerParams(
            dimension_semantics=("parallel", "parallel"),
            vmem_limit_bytes=64 * 1024 * 1024,
        ),
    )(flags, f_p, w_p, cosm_p, ftl_p, tgt_p.reshape(Bp, 1),
      t_new.astype(jnp.float32).reshape(1, 1))

    return logits_p[:B, :C], t_new.reshape(1)


# ---------------------------- pure-JAX reference -------------------------------
def arcface_reference(features, weight, targets, t, compute_dtype=jnp.bfloat16):
    f_c, w_c, cos_theta_m, ftl_scaled, t_new = _arcface_prepass(
        features, weight, targets, t, compute_dtype)
    cos = jax.lax.dot_general(
        f_c, w_c, dimension_numbers=(((1,), (1,)), ((), ())),
        preferred_element_type=jnp.float32)
    cos = jnp.clip(cos, -1.0, 1.0)
    scaled = cos * SCALE
    out = jnp.where(cos > cos_theta_m, scaled * (t_new + cos), scaled)
    onehot = jax.nn.one_hot(targets, weight.shape[0], dtype=bool)
    out = jnp.where(onehot, ftl_scaled, out)
    return out, t_new.reshape(1)


if __name__ == "__main__":
    B, D, C = 8, 128, 512   # batch, in_feat, num_classes (small demo shapes)

    key = jax.random.PRNGKey(0)
    k_feat, k_w, k_tgt = jax.random.split(key, 3)
    features = jax.random.normal(k_feat, (B, D), dtype=jnp.float32)
    weight = jax.random.normal(k_w, (C, D), dtype=jnp.float32)   # Parameter(C, D)
    targets = jax.random.randint(k_tgt, (B,), 0, C, dtype=jnp.int32)
    t_buf = jnp.zeros((1,), dtype=jnp.float32)                   # register_buffer('t')

    # small class tiles so the demo exercises the multi-tile grid / pl.when path
    logits, t_new = arcface_forward(features, weight, targets, t_buf,
                                    block_b=128, block_c=128)
    jax.block_until_ready((logits, t_new))

    ref_logits, ref_t = arcface_reference(features, weight, targets, t_buf)
    assert logits.shape == (B, C)
    assert np.allclose(np.asarray(logits), np.asarray(ref_logits),
                       atol=1e-2, rtol=1e-2)
    assert np.allclose(np.asarray(t_new), np.asarray(ref_t), atol=1e-6)

    print("KERNEL_OK")
</pallas_src>

<mosaic_0001>
module attributes {stable_mosaic.version = 11 : i64} {
  func.func @_arcface_tile_kernel(%arg0: i32, %arg1: i32, %arg2: memref<4xi32, #tpu.memory_space<smem>>, %arg3: memref<8x128xbf16, #tpu.memory_space<vmem>>, %arg4: memref<128x128xbf16, #tpu.memory_space<vmem>>, %arg5: memref<8x1xf32, #tpu.memory_space<vmem>>, %arg6: memref<8x1xf32, #tpu.memory_space<vmem>>, %arg7: memref<8x1xi32, #tpu.memory_space<vmem>>, %arg8: memref<1x1xf32, #tpu.memory_space<smem>>, %arg9: memref<8x128xf32, #tpu.memory_space<vmem>>) attributes {dimension_semantics = [#tpu.dimension_semantics<parallel>, #tpu.dimension_semantics<parallel>], iteration_bounds = array<i64: 1, 4>, scalar_prefetch = 1 : i64, scratch_operands = 0 : i64, tpu.core_type = #tpu.core_type<tc>, window_params = [{transform_indices = @transform_0, window_bounds = array<i64: 8, 128>}, {transform_indices = @transform_1, window_bounds = array<i64: 128, 128>}, {transform_indices = @transform_2, window_bounds = array<i64: 8, 1>}, {transform_indices = @transform_3, window_bounds = array<i64: 8, 1>}, {transform_indices = @transform_4, window_bounds = array<i64: 8, 1>}, {transform_indices = @transform_5, window_bounds = array<i64: 1, 1>}, {transform_indices = @transform_6, window_bounds = array<i64: 8, 128>}]} {
    %c0 = arith.constant 0 : index
    %c0_0 = arith.constant 0 : index
    %0 = vector.load %arg3[%c0, %c0_0] : memref<8x128xbf16, #tpu.memory_space<vmem>>, vector<8x128xbf16>
    %c0_1 = arith.constant 0 : index
    %c0_2 = arith.constant 0 : index
    %1 = vector.load %arg4[%c0_1, %c0_2] : memref<128x128xbf16, #tpu.memory_space<vmem>>, vector<128x128xbf16>
    %cst = arith.constant dense<0.000000e+00> : vector<8x128xf32>
    %2 = tpu.matmul %0, %1, %cst {dimension_numbers = #tpu.dot_dimension_numbers<[1], [1], [0], [0], [0, 0, 1, 0], [], []>} : vector<8x128xbf16>, vector<128x128xbf16>, vector<8x128xf32> -> vector<8x128xf32>
    %cst_3 = arith.constant -1.000000e+00 : f32
    %cst_4 = arith.constant 1.000000e+00 : f32
    %3 = vector.broadcast %cst_3 : f32 to vector<8x128xf32>
    %4 = arith.maximumf %3, %2 : vector<8x128xf32>
    %5 = vector.broadcast %cst_4 : f32 to vector<8x128xf32>
    %6 = arith.minimumf %5, %4 : vector<8x128xf32>
    %c0_5 = arith.constant 0 : index
    %c0_6 = arith.constant 0 : index
    %7 = memref.load %arg8[%c0_5, %c0_6] : memref<1x1xf32, #tpu.memory_space<smem>>
    %cst_7 = arith.constant 3.000000e+01 : f32
    %8 = vector.broadcast %cst_7 : f32 to vector<8x128xf32>
    %9 = arith.mulf %6, %8 : vector<8x128xf32>
    %10 = vector.broadcast %7 : f32 to vector<8x128xf32>
    %11 = arith.addf %10, %6 : vector<8x128xf32>
    %12 = arith.mulf %9, %11 : vector<8x128xf32>
    %c0_8 = arith.constant 0 : index
    %c0_9 = arith.constant 0 : index
    %13 = vector.load %arg5[%c0_8, %c0_9] : memref<8x1xf32, #tpu.memory_space<vmem>>, vector<8x1xf32>
    %14 = vector.broadcast %13 : vector<8x1xf32> to vector<8x128xf32>
    %15 = arith.cmpf ogt, %6, %14 : vector<8x128xf32>
    %16 = arith.select %15, %12, %9 : vector<8x128xi1>, vector<8x128xf32>
    %c0_10 = arith.constant 0 : index
    %c0_11 = arith.constant 0 : index
    %17 = vector.load %arg9[%c0_10, %c0_11] : memref<8x128xf32, #tpu.memory_space<vmem>>, vector<8x128xf32>
    tpu.vector_store %arg9[%c0_10, %c0_11], %16 {strides = array<i32>} : memref<8x128xf32, #tpu.memory_space<vmem>>, vector<8x128xf32>,
    %c4_i32 = arith.constant 4 : i32
    %18 = arith.muli %arg0, %c4_i32 : i32
    %19 = arith.addi %18, %arg1 : i32
    %20 = arith.index_cast %19 : i32 to index
    %21 = memref.load %arg2[%20] : memref<4xi32, #tpu.memory_space<smem>>
    %c0_i32 = arith.constant 0 : i32
    %22 = arith.cmpi sgt, %21, %c0_i32 : i32
    %23 = arith.extui %22 : i1 to i32
    %c0_i32_12 = arith.constant 0 : i32
    %24 = arith.cmpi ne, %23, %c0_i32_12 : i32
    scf.if %24 {
      %25 = tpu.iota {dimensions = array<i32: 1>} : vector<8x128xi32>
      %c128_i32 = arith.constant 128 : i32
      %26 = arith.muli %arg1, %c128_i32 : i32
      %27 = vector.broadcast %26 : i32 to vector<8x128xi32>
      %28 = arith.addi %25, %27 : vector<8x128xi32>
      %c0_13 = arith.constant 0 : index
      %c0_14 = arith.constant 0 : index
      %29 = vector.load %arg7[%c0_13, %c0_14] : memref<8x1xi32, #tpu.memory_space<vmem>>, vector<8x1xi32>
      %30 = vector.broadcast %29 : vector<8x1xi32> to vector<8x128xi32>
      %31 = arith.cmpi eq, %28, %30 : vector<8x128xi32>
      %c0_15 = arith.constant 0 : index
      %c0_16 = arith.constant 0 : index
      %32 = vector.load %arg6[%c0_15, %c0_16] : memref<8x1xf32, #tpu.memory_space<vmem>>, vector<8x1xf32>
      %c0_17 = arith.constant 0 : index
      %c0_18 = arith.constant 0 : index
      %33 = vector.load %arg9[%c0_17, %c0_18] : memref<8x128xf32, #tpu.memory_space<vmem>>, vector<8x128xf32>
      %34 = vector.shape_cast %32 : vector<8x1xf32> to vector<8x1xf32>
      %35 = vector.broadcast %34 : vector<8x1xf32> to vector<8x128xf32>
      %36 = arith.select %31, %35, %33 : vector<8x128xi1>, vector<8x128xf32>
      %c0_19 = arith.constant 0 : index
      %c0_20 = arith.constant 0 : index
      %37 = vector.load %arg9[%c0_19, %c0_20] : memref<8x128xf32, #tpu.memory_space<vmem>>, vector<8x128xf32>
      tpu.vector_store %arg9[%c0_19, %c0_20], %36 {strides = array<i32>} : memref<8x128xf32, #tpu.memory_space<vmem>>, vector<8x128xf32>,
    } else {
    }
    return
  }
  func.func @transform_0(%arg0: i32, %arg1: i32, %arg2: memref<4xi32, #tpu.memory_space<smem>>) -> (i32, i32) {
    %c0_i32 = arith.constant 0 : i32
    %c0_i32_0 = arith.constant 0 : i32
    return %arg0, %c0_i32 : i32, i32
  }
  func.func @transform_1(%arg0: i32, %arg1: i32, %arg2: memref<4xi32, #tpu.memory_space<smem>>) -> (i32, i32) {
    %c0_i32 = arith.constant 0 : i32
    %c0_i32_0 = arith.constant 0 : i32
    return %arg1, %c0_i32 : i32, i32
  }
  func.func @transform_2(%arg0: i32, %arg1: i32, %arg2: memref<4xi32, #tpu.memory_space<smem>>) -> (i32, i32) {
    %c0_i32 = arith.constant 0 : i32
    %c0_i32_0 = arith.constant 0 : i32
    return %arg0, %c0_i32 : i32, i32
  }
  func.func @transform_3(%arg0: i32, %arg1: i32, %arg2: memref<4xi32, #tpu.memory_space<smem>>) -> (i32, i32) {
    %c0_i32 = arith.constant 0 : i32
    %c0_i32_0 = arith.constant 0 : i32
    return %arg0, %c0_i32 : i32, i32
  }
  func.func @transform_4(%arg0: i32, %arg1: i32, %arg2: memref<4xi32, #tpu.memory_space<smem>>) -> (i32, i32) {
    %c0_i32 = arith.constant 0 : i32
    %c0_i32_0 = arith.constant 0 : i32
    return %arg0, %c0_i32 : i32, i32
  }
  func.func @transform_5(%arg0: i32, %arg1: i32, %arg2: memref<4xi32, #tpu.memory_space<smem>>) -> (i32, i32) {
    %c0_i32 = arith.constant 0 : i32
    %c0_i32_0 = arith.constant 0 : i32
    %c0_i32_1 = arith.constant 0 : i32
    return %c0_i32, %c0_i32_0 : i32, i32
  }
  func.func @transform_6(%arg0: i32, %arg1: i32, %arg2: memref<4xi32, #tpu.memory_space<smem>>) -> (i32, i32) {
    %c0_i32 = arith.constant 0 : i32
    return %arg0, %arg1 : i32, i32
  }
}

</mosaic_0001>

<llo_original>
// kernel: tpu_custom_call.1
$region0: #{tpu_custom_call.1}
  #allocation0 [shape = 'u32[]', space=smem, size = 0x4, offset = 0x4, fixed_abs, tag = 'smem constant byte address 0x4 - core index']
  #allocation1 [shape = 'u32[144,128]{1,0:T(1,128)}', space=vmem, size = 0x12000, scoped, tag = 'internal scratch']
  #allocation2 [shape = 's32[1]{0}', space=sflag, size = 0x4, scoped, tag = 'scoped memory for tpu_custom_call.1']
  #allocation3 [shape = 'u8[512]{0}', space=smem, size = 0x200, scoped, tag = 'prefetched SMEM operand 0']
  #allocation4 [shape = 'f32[1,1]{1,0:T(1,128)S(6)}', space=smem, size = 0x200, scoped, tag = 'scoped memory for tpu_custom_call.1']
  %s0 = inlined_call_operand.vmem [shape: s32[4], index: 0, kind: input, shape index: {}]
  %s1 = inlined_call_operand.vmem [shape: bf16[8,128], index: 1, kind: input, shape index: {}]
  %s2 = inlined_call_operand.hbm [shape: bf16[512,128], index: 2, kind: input, shape index: {}]
  %s3 = inlined_call_operand.vmem [shape: f32[8,1], index: 3, kind: input, shape index: {}]
  %s4 = inlined_call_operand.vmem [shape: f32[8,1], index: 4, kind: input, shape index: {}]
  %s5 = inlined_call_operand.vmem [shape: s32[8,1], index: 5, kind: input, shape index: {}]
  %s6 = inlined_call_operand.<no memory space> [shape: f32[1,1], index: 6, kind: input, shape index: {}]
  %s7 = inlined_call_operand.hbm [shape: f32[8,512], index: 7, kind: output, shape index: {}]
  %s8 = sld [smem:[#allocation0]]
  $region65: #{tpu_custom_call.1} parent=0
    _
  %s10 = ssub.s32 1, %s8
  %s11 = scalar_select 0, %s10, %s8
  %s12 = sshll.u32 %s0, 4
  %s13 = int_to_ptr.vmem [resolvable:$true] %s12
  %15 = dma.vmem_to_smem %s13, 16, [#allocation3], [#allocation2]
  %16 = sst [smem:[#allocation4]] %s6
  %17 = dma.done [#allocation2], 16
  %18 = sfence
  $region1: #{tpu_custom_call.1} parent=0
    #allocation5 [shape = 'u8[65536]{0}', space=vmem, size = 0x10000, scoped, tag = 'input window, operand 2']
    #allocation6 [shape = 's32[2]{0}', space=sflag, size = 0x8, scoped, tag = 'scoped memory for tpu_custom_call.1']
    #allocation7 [shape = 's32[2]{0}', space=sflag, size = 0x8, scoped, tag = 'scoped memory for tpu_custom_call.1']
    #allocation8 [shape = 'u8[8192]{0}', space=vmem, size = 0x2000, scoped, tag = 'output window, operand 0']
    %19 = vsyncpa [#allocation6], 0
    %s20 = scalar_lea.sflag [#allocation6], 1
    %21 = vsyncpa %s20, 0
    %22 = vsyncpa [#allocation7], 0
    %s23 = scalar_lea.sflag [#allocation7], 1
    %24 = vsyncpa %s23, 0
    loop: start=0, step=1, limit=6
    $region2: #{tpu_custom_call.1} parent=1 // loop_pre_header
      _
    $region3: #{tpu_custom_call.1} parent=1 // loop_header
      %s26 = sphi 0, %s30
      %p27 = scmp.ge.s32.totalorder %s26, 6
      %s33 = sphi 0, %s45
      %s34 = sphi 0, %s41
      %s35 = sphi 0, %s33
      %s36 = sphi 0, %s34
      %s37 = sphi 0, %s35
      %s38 = sphi 0, %s36
      %s48 = sphi 0, %s50
      %s51 = sphi 0, %s48
      %s52 = sphi 0, %s51
      %s68 = sphi 0, %s52
      %s74 = sphi 0, %s76
      %s77 = sphi 0, %s74
      %s78 = sphi 0, %s77
      %s94 = sphi 0, %s78
      %s100 = sphi 0, %s102
      %s103 = sphi 0, %s100
      %s104 = sphi 0, %s103
      %s120 = sphi 0, %s104
      %s126 = sphi 0, %s128
      %s129 = sphi 0, %s126
      %s130 = sphi 0, %s129
      %s146 = sphi 0, %s130
      %s152 = sphi 0, %s154
      %s155 = sphi 0, %s152
      %s156 = sphi 0, %s155
      %s172 = sphi 0, %s156
      %s176 = sphi 0, %s176
      %s178 = sphi 0, %s176
      %s179 = sphi 0, %s178
      %s193 = sphi 0, %s179
      %s201 = sphi 0, %s203
      %s204 = sphi 0, %s201
      %s205 = sphi 0, %s204
      %s221 = sphi 0, %s205
    $region4: #{tpu_custom_call.1} parent=1 // loop_header_branch
      %29 = sbr.rel (%p27) target = $region8
    $region5: #{tpu_custom_call.1} parent=1 // loop_body
      %s31 = ssub.s32 %s26, 1
      %s32 = ssub.s32 %s26, 2
      %s39 = sadd.s32 1, %s34
      %p40 = scmp.ge.s32.totalorder %s39, 4
      %s41 = scalar_select %p40, 0, %s39
      %s42 = sadd.s32 1, %s33
      %s43 = scalar_select %p40, %s42, %s33
      %p44 = scmp.ge.s32.totalorder %s43, 1
      %s45 = scalar_select %p44, 0, %s43
      %s46 = ssub.s32 %s33, %s45
      %p47 = scmp.eq.s32.totalorder %s46, 0
      %s49 = sadd.s32 %s48, 1
      %s50 = scalar_select %p47, %s48, %s49
      %p53 = pneg %p47
      %p54 = scmp.eq.s32.totalorder %s26, 3
      %p55 = por %p53, %p54
      %p56 = scmp.ne.s32.totalorder %s48, %s51
      %p57 = scmp.eq.s32.totalorder %s26, 0
      %p58 = por %p56, %p57
      %p59 = scmp.ne.s32.totalorder %s48, %s51
      %p60 = scmp.eq.s32.totalorder %s31, 3
      %p61 = por %p59, %p60
      %p62 = scmp.ne.s32.totalorder %s51, %s52
      %p63 = scmp.eq.s32.totalorder %s31, 0
      %p64 = por %p62, %p63
      %p65 = scmp.ne.s32.totalorder %s51, %s52
      %p66 = scmp.eq.s32.totalorder %s32, 3
      %p67 = por %p65, %p66
      %p69 = scmp.ne.s32.totalorder %s52, %s68
      %p70 = scmp.eq.s32.totalorder %s32, 0
      %p71 = por %p69, %p70
      %s72 = ssub.s32 %s34, %s41
      %p73 = scmp.eq.s32.totalorder %s72, 0
      %s75 = sadd.s32 %s74, 1
      %s76 = scalar_select %p73, %s74, %s75
      %p79 = pneg %p73
      %p80 = scmp.eq.s32.totalorder %s26, 3
      %p81 = por %p79, %p80
      %p82 = scmp.ne.s32.totalorder %s74, %s77
      %p83 = scmp.eq.s32.totalorder %s26, 0
      %p84 = por %p82, %p83
      %p85 = scmp.ne.s32.totalorder %s74, %s77
      %p86 = scmp.eq.s32.totalorder %s31, 3
      %p87 = por %p85, %p86
      %p88 = scmp.ne.s32.totalorder %s77, %s78
      %p89 = scmp.eq.s32.totalorder %s31, 0
      %p90 = por %p88, %p89
      %p91 = scmp.ne.s32.totalorder %s77, %s78
      %p92 = scmp.eq.s32.totalorder %s32, 3
      %p93 = por %p91, %p92
      %p95 = scmp.ne.s32.totalorder %s78, %s94
      %p96 = scmp.eq.s32.totalorder %s32, 0
      %p97 = por %p95, %p96
      %s98 = ssub.s32 %s33, %s45
      %p99 = scmp.eq.s32.totalorder %s98, 0
      %s101 = sadd.s32 %s100, 1
      %s102 = scalar_select %p99, %s100, %s101
      %p105 = pneg %p99
      %p106 = scmp.eq.s32.totalorder %s26, 3
      %p107 = por %p105, %p106
      %p108 = scmp.ne.s32.totalorder %s100, %s103
      %p109 = scmp.eq.s32.totalorder %s26, 0
      %p110 = por %p108, %p109
      %p111 = scmp.ne.s32.totalorder %s100, %s103
      %p112 = scmp.eq.s32.totalorder %s31, 3
      %p113 = por %p111, %p112
      %p114 = scmp.ne.s32.totalorder %s103, %s104
      %p115 = scmp.eq.s32.totalorder %s31, 0
      %p116 = por %p114, %p115
      %p117 = scmp.ne.s32.totalorder %s103, %s104
      %p118 = scmp.eq.s32.totalorder %s32, 3
      %p119 = por %p117, %p118
      %p121 = scmp.ne.s32.totalorder %s104, %s120
      %p122 = scmp.eq.s32.totalorder %s32, 0
      %p123 = por %p121, %p122
      %s124 = ssub.s32 %s33, %s45
      %p125 = scmp.eq.s32.totalorder %s124, 0
      %s127 = sadd.s32 %s126, 1
      %s128 = scalar_select %p125, %s126, %s127
      %p131 = pneg %p125
      %p132 = scmp.eq.s32.totalorder %s26, 3
      %p133 = por %p131, %p132
      %p134 = scmp.ne.s32.totalorder %s126, %s129
      %p135 = scmp.eq.s32.totalorder %s26, 0
      %p136 = por %p134, %p135
      %p137 = scmp.ne.s32.totalorder %s126, %s129
      %p138 = scmp.eq.s32.totalorder %s31, 3
      %p139 = por %p137, %p138
      %p140 = scmp.ne.s32.totalorder %s129, %s130
      %p141 = scmp.eq.s32.totalorder %s31, 0
      %p142 = por %p140, %p141
      %p143 = scmp.ne.s32.totalorder %s129, %s130
      %p144 = scmp.eq.s32.totalorder %s32, 3
      %p145 = por %p143, %p144
      %p147 = scmp.ne.s32.totalorder %s130, %s146
      %p148 = scmp.eq.s32.totalorder %s32, 0
      %p149 = por %p147, %p148
      %s150 = ssub.s32 %s33, %s45
      %p151 = scmp.eq.s32.totalorder %s150, 0
      %s153 = sadd.s32 %s152, 1
      %s154 = scalar_select %p151, %s152, %s153
      %p157 = pneg %p151
      %p158 = scmp.eq.s32.totalorder %s26, 3
      %p159 = por %p157, %p158
      %p160 = scmp.ne.s32.totalorder %s152, %s155
      %p161 = scmp.eq.s32.totalorder %s26, 0
      %p162 = por %p160, %p161
      %p163 = scmp.ne.s32.totalorder %s152, %s155
      %p164 = scmp.eq.s32.totalorder %s31, 3
      %p165 = por %p163, %p164
      %p166 = scmp.ne.s32.totalorder %s155, %s156
      %p167 = scmp.eq.s32.totalorder %s31, 0
      %p168 = por %p166, %p167
      %p169 = scmp.ne.s32.totalorder %s155, %s156
      %p170 = scmp.eq.s32.totalorder %s32, 3
      %p171 = por %p169, %p170
      %p173 = scmp.ne.s32.totalorder %s156, %s172
      %p174 = scmp.eq.s32.totalorder %s32, 0
      %p175 = por %p173, %p174
      %s177 = sadd.s32 %s176, 1
      %p180 = scmp.eq.s32.totalorder %s26, 3
      %p181 = scmp.ne.s32.totalorder %s176, %s178
      %p182 = scmp.eq.s32.totalorder %s26, 0
      %p183 = por %p181, %p182
      %p184 = scmp.ne.s32.totalorder %s176, %s178
      %p185 = scmp.eq.s32.totalorder %s31, 3
      %p186 = por %p184, %p185
      %p187 = scmp.ne.s32.totalorder %s178, %s179
      %p188 = scmp.eq.s32.totalorder %s31, 0
      %p189 = por %p187, %p188
      %p190 = scmp.ne.s32.totalorder %s178, %s179
      %p191 = scmp.eq.s32.totalorder %s32, 3
      %p192 = por %p190, %p191
      %p194 = scmp.ne.s32.totalorder %s179, %s193
      %p195 = scmp.eq.s32.totalorder %s32, 0
      %p196 = por %p194, %p195
      %s197 = ssub.s32 %s33, %s45
      %s198 = ssub.s32 %s34, %s41
      %s199 = sor.u32 %s197, %s198
      %p200 = scmp.eq.s32.totalorder %s199, 0
      %s202 = sadd.s32 %s201, 1
      %s203 = scalar_select %p200, %s201, %s202
      %p206 = pneg %p200
      %p207 = scmp.eq.s32.totalorder %s26, 3
      %p208 = por %p206, %p207
      %p209 = scmp.ne.s32.totalorder %s201, %s204
      %p210 = scmp.eq.s32.totalorder %s26, 0
      %p211 = por %p209, %p210
      %p212 = scmp.ne.s32.totalorder %s201, %s204
      %p213 = scmp.eq.s32.totalorder %s31, 3
      %p214 = por %p212, %p213
      %p215 = scmp.ne.s32.totalorder %s204, %s205
      %p216 = scmp.eq.s32.totalorder %s31, 0
      %p217 = por %p215, %p216
      %p218 = scmp.ne.s32.totalorder %s204, %s205
      %p219 = scmp.eq.s32.totalorder %s32, 3
      %p220 = por %p218, %p219
      %p222 = scmp.ne.s32.totalorder %s205, %s221
      %p223 = scmp.eq.s32.totalorder %s32, 0
      %p224 = por %p222, %p223
      %p225 = scmp.le.s32.totalorder 1, %s26
      %p226 = scmp.lt.s32.totalorder %s26, 5
      %p227 = pnand %p225, %p226
      %p228 = pneg %p227
      // Predicated region
      $region9: #{tpu_custom_call.1} parent=5 // pred_check
        _
      $region10: #{tpu_custom_call.1} parent=5 // pred_check_branch
        %230 = sbr.rel (%p227) target = $region12
      $region11: #{tpu_custom_call.1} parent=5 // pred_region
        %s231 = ssub.s32 %s26, 1
        // Predicated region
        $region13: #{tpu_custom_call.1} parent=11 // pred_check
          %p232 = pneg %p64
        $region14: #{tpu_custom_call.1} parent=11 // pred_check_branch
          %234 = sbr.rel (%p232) target = $region16
        $region15: #{tpu_custom_call.1} parent=11 // pred_region
          %p235 = scmp.lt.s32.totalorder %s35, 0
          %s236 = scalar_select %p235, %s35, 0
          %s237 = smul.addr %s236, 4
          %s238 = scalar_lea.vmem %s1, %s237
        $region16: #{tpu_custom_call.1} parent=11 // pred_fallthru
          _
        // Predicated region
        $region17: #{tpu_custom_call.1} parent=11 // pred_check
          %p239 = pneg %p116
        $region18: #{tpu_custom_call.1} parent=11 // pred_check_branch
          %241 = sbr.rel (%p239) target = $region20
        $region19: #{tpu_custom_call.1} parent=11 // pred_region
          %p242 = scmp.lt.s32.totalorder %s35, 0
          %s243 = scalar_select %p242, %s35, 0
          %s244 = smul.addr %s243, 8
          %s245 = scalar_lea.vmem %s3, %s244
        $region20: #{tpu_custom_call.1} parent=11 // pred_fallthru
          _
        // Predicated region
        $region21: #{tpu_custom_call.1} parent=11 // pred_check
          %p246 = pneg %p142
        $region22: #{tpu_custom_call.1} parent=11 // pred_check_branch
          %248 = sbr.rel (%p246) target = $region24
        $region23: #{tpu_custom_call.1} parent=11 // pred_region
          %p249 = scmp.lt.s32.totalorder %s35, 0
          %s250 = scalar_select %p249, %s35, 0
          %s251 = smul.addr %s250, 8
          %s252 = scalar_lea.vmem %s4, %s251
        $region24: #{tpu_custom_call.1} parent=11 // pred_fallthru
          _
        // Predicated region
        $region25: #{tpu_custom_call.1} parent=11 // pred_check
          %p253 = pneg %p168
        $region26: #{tpu_custom_call.1} parent=11 // pred_check_branch
          %255 = sbr.rel (%p253) target = $region28
        $region27: #{tpu_custom_call.1} parent=11 // pred_region
          %p256 = scmp.lt.s32.totalorder %s35, 0
          %s257 = scalar_select %p256, %s35, 0
          %s258 = smul.addr %s257, 8
          %s259 = scalar_lea.vmem %s5, %s258
        $region28: #{tpu_custom_call.1} parent=11 // pred_fallthru
          _
        // Predicated region
        $region29: #{tpu_custom_call.1} parent=11 // pred_check
          %p260 = pneg %p189
        $region30: #{tpu_custom_call.1} parent=11 // pred_check_branch
          %262 = sbr.rel (%p260) target = $region32
        $region31: #{tpu_custom_call.1} parent=11 // pred_region
          _
        $region32: #{tpu_custom_call.1} parent=11 // pred_fallthru
          _
      $region12: #{tpu_custom_call.1} parent=5 // pred_fallthru
        _
      %p263 = scmp.lt.s32.totalorder %s26, 4
      // Predicated region
      $region33: #{tpu_custom_call.1} parent=5 // pred_check
        %p264 = pneg %p263
      $region34: #{tpu_custom_call.1} parent=5 // pred_check_branch
        %266 = sbr.rel (%p264) target = $region36
      $region35: #{tpu_custom_call.1} parent=5 // pred_region
        // Predicated region
        $region37: #{tpu_custom_call.1} parent=35 // pred_check
          %p267 = pneg %p84
        $region38: #{tpu_custom_call.1} parent=35 // pred_check_branch
          %269 = sbr.rel (%p267) target = $region40
        $region39: #{tpu_custom_call.1} parent=35 // pred_region
          %s270 = sand.u32 %s74, 1
          %s271 = scalar_lea.sflag [#allocation6], %s270
          %s272 = sand.u32 %s74, 1
          %s273 = smul.addr %s272, 64
          %s274 = scalar_lea.vmem [#allocation5], %s273
          %s275 = smul.u32 16, %s34
          %s277 = ssub.s32 1024, 1024
          %278 = vsyncadd %s271, %s277
          %s279 = smul.addr %s275, 64
          %s280 = scalar_lea.hbm %s2, %s279
          %s281 = sshll.u32 %s274, 4
          %s282 = int_to_ptr.vmem [resolvable:$true] %s281
          %287 = dma.hbm_to_vmem [thread:$0]  %s280, 1024, %s282, %s271, 64, 64, 4
        $region40: #{tpu_custom_call.1} parent=35 // pred_fallthru
          _
      $region36: #{tpu_custom_call.1} parent=5 // pred_fallthru
        _
      %p288 = scmp.le.s32.totalorder 1, %s26
      %p289 = scmp.lt.s32.totalorder %s26, 5
      %p290 = pnand %p288, %p289
      %p291 = pneg %p290
      // Predicated region
      $region41: #{tpu_custom_call.1} parent=5 // pred_check
        _
      $region42: #{tpu_custom_call.1} parent=5 // pred_check_branch
        %293 = sbr.rel (%p290) target = $region44
      $region43: #{tpu_custom_call.1} parent=5 // pred_region
        %s294 = ssub.s32 %s26, 1
        %s295 = sand.u32 %s77, 1
        %s296 = scalar_lea.sflag [#allocation6], %s295
        %s297 = sand.u32 %s77, 1
        %s298 = smul.addr %s297, 64
        %s299 = scalar_lea.vmem [#allocation5], %s298
        // Predicated region
        $region45: #{tpu_custom_call.1} parent=43 // pred_check
          %p300 = pneg %p90
        $region46: #{tpu_custom_call.1} parent=43 // pred_check_branch
          %302 = sbr.rel (%p300) target = $region48
        $region47: #{tpu_custom_call.1} parent=43 // pred_region
          %303 = dma.done %s296, 1024
        $region48: #{tpu_custom_call.1} parent=43 // pred_fallthru
          _
        %p304 = scmp.lt.s32.totalorder %s35, 0
        %s305 = scalar_select %p304, %s35, 0
        %s306 = smul.addr %s305, 4
        %s307 = scalar_lea.vmem %s1, %s306
        %p308 = pneg %p64
        %p309 = pneg %p61
        %s310 = sand.u32 %s77, 1
        %s311 = scalar_lea.sflag [#allocation6], %s310
        %s312 = sand.u32 %s77, 1
        %s313 = smul.addr %s312, 64
        %s314 = scalar_lea.vmem [#allocation5], %s313
        %p315 = pneg %p90
        %p316 = pneg %p87
        %p317 = scmp.lt.s32.totalorder %s35, 0
        %s318 = scalar_select %p317, %s35, 0
        %s319 = smul.addr %s318, 8
        %s320 = scalar_lea.vmem %s3, %s319
        %p321 = pneg %p116
        %p322 = pneg %p113
        %p323 = scmp.lt.s32.totalorder %s35, 0
        %s324 = scalar_select %p323, %s35, 0
        %s325 = smul.addr %s324, 8
        %s326 = scalar_lea.vmem %s4, %s325
        %p327 = pneg %p142
        %p328 = pneg %p139
        %p329 = scmp.lt.s32.totalorder %s35, 0
        %s330 = scalar_select %p329, %s35, 0
        %s331 = smul.addr %s330, 8
        %s332 = scalar_lea.vmem %s5, %s331
        %p333 = pneg %p168
        %p334 = pneg %p165
        %p335 = pneg %p189
        %p336 = pneg %p186
        %p337 = pneg %p217
        %p338 = pneg %p214
        %s339 = sand.u32 %s204, 1
        %s340 = scalar_lea.sflag [#allocation7], %s339
        %s341 = sand.u32 %s204, 1
        %s342 = smul.addr %s341, 8
        %s343 = scalar_lea.vmem [#allocation8], %s342
        %p344 = scmp.lt.s32.totalorder %s35, 0
        %s345 = scalar_select %p344, %s35, 0
        %s346 = smul.addr %s345, 4
        %s347 = scalar_lea.vmem %s1, %s346
        %s348 = smul.u32 16, %s36
        %p349 = scmp.lt.s32.totalorder %s35, 0
        %s350 = scalar_select %p349, %s35, 0
        %s351 = smul.addr %s350, 8
        %s352 = scalar_lea.vmem %s3, %s351
        %p353 = scmp.lt.s32.totalorder %s35, 0
        %s354 = scalar_select %p353, %s35, 0
        %s355 = smul.addr %s354, 8
        %s356 = scalar_lea.vmem %s4, %s355
        %p357 = scmp.lt.s32.totalorder %s35, 0
        %s358 = scalar_select %p357, %s35, 0
        %s359 = smul.addr %s358, 8
        %s360 = scalar_lea.vmem %s5, %s359
        %v362 = vld [vmem:[%s347] sm:$0xf]
        %v363 = vld [vmem:[%s299] sm:$0xf]
        %v364 = vld [vmem:[%s299 + $0x4] sm:$0xf]
        %v365 = vld [vmem:[%s299 + $0x8] sm:$0xf]
        %v366 = vld [vmem:[%s299 + $0xc] sm:$0xf]
        %v367 = vld [vmem:[%s299 + $0x10] sm:$0xf]
        %v368 = vld [vmem:[%s299 + $0x14] sm:$0xf]
        %v369 = vld [vmem:[%s299 + $0x18] sm:$0xf]
        %v370 = vld [vmem:[%s299 + $0x1c] sm:$0xf]
        %v371 = vld [vmem:[%s299 + $0x20] sm:$0xf]
        %v372 = vld [vmem:[%s299 + $0x24] sm:$0xf]
        %v373 = vld [vmem:[%s299 + $0x28] sm:$0xf]
        %v374 = vld [vmem:[%s299 + $0x2c] sm:$0xf]
        %v375 = vld [vmem:[%s299 + $0x30] sm:$0xf]
        %v376 = vld [vmem:[%s299 + $0x34] sm:$0xf]
        %v377 = vld [vmem:[%s299 + $0x38] sm:$0xf]
        %v378 = vld [vmem:[%s299 + $0x3c] sm:$0xf]
        %v395 = vunpack.c.l.b16 %v363
        %v396 = vunpack.c.l.b16 %v364
        %v397 = vunpack.c.l.b16 %v365
        %v398 = vunpack.c.l.b16 %v366
        %v399 = vunpack.c.l.b16 %v367
        %v400 = vunpack.c.l.b16 %v368
        %v401 = vunpack.c.l.b16 %v369
        %v402 = vunpack.c.l.b16 %v370
        %v403 = vunpack.c.l.b16 %v371
        %v404 = vunpack.c.l.b16 %v372
        %v405 = vunpack.c.l.b16 %v373
        %v406 = vunpack.c.l.b16 %v374
        %v407 = vunpack.c.l.b16 %v375
        %v408 = vunpack.c.l.b16 %v376
        %v409 = vunpack.c.l.b16 %v377
        %v410 = vunpack.c.l.b16 %v378
        %v411 = vpack.c.b16 %v396, %v395
        %v412 = vpack.c.b16 %v398, %v397
        %v413 = vpack.c.b16 %v400, %v399
        %v414 = vpack.c.b16 %v402, %v401
        %v415 = vpack.c.b16 %v404, %v403
        %v416 = vpack.c.b16 %v406, %v405
        %v417 = vpack.c.b16 %v408, %v407
        %v418 = vpack.c.b16 %v410, %v409
        %427 = vmatprep.subr.bf16.mxu0 0
        %428 = vmatpush1.bf16.xpose.msra.mxu0 %v418
        %429 = vmatprep.subr.bf16.mxu0 0
        %430 = vmatpush1.bf16.xpose.msra.mxu0 %v417
        %431 = vmatprep.subr.bf16.mxu0 0
        %432 = vmatpush1.bf16.xpose.msra.mxu0 %v416
        %433 = vmatprep.subr.bf16.mxu0 0
        %434 = vmatpush1.bf16.xpose.msra.mxu0 %v415
        %435 = vmatprep.subr.bf16.mxu0 0
        %436 = vmatpush1.bf16.xpose.msra.mxu0 %v414
        %437 = vmatprep.subr.bf16.mxu0 0
        %438 = vmatpush1.bf16.xpose.msra.mxu0 %v413
        %439 = vmatprep.subr.bf16.mxu0 0
        %440 = vmatpush1.bf16.xpose.msra.mxu0 %v412
        %441 = vmatprep.subr.bf16.mxu0 0
        %442 = vmatpush1.bf16.xpose.msra.mxu0 %v411
        %443 = vmatprep.subr.bf16.mxu0 0
        %444 = vmatpush2.bf16.xpose.msra.mxu0 0
        %445 = vmatprep.subr.bf16.mxu0 0
        %446 = vmatpush2.bf16.xpose.msra.mxu0 0
        %447 = vmatprep.subr.bf16.mxu0 0
        %448 = vmatpush2.bf16.xpose.msra.mxu0 0
        %449 = vmatprep.subr.bf16.mxu0 0
        %450 = vmatpush2.bf16.xpose.msra.mxu0 0
        %451 = vmatprep.subr.bf16.mxu0 0
        %452 = vmatpush2.bf16.xpose.msra.mxu0 0
        %453 = vmatprep.subr.bf16.mxu0 0
        %454 = vmatpush2.bf16.xpose.msra.mxu0 0
        %455 = vmatprep.subr.bf16.mxu0 0
        %456 = vmatpush2.bf16.xpose.msra.mxu0 0
        %457 = vmatprep.subr.bf16.mxu0 0
        %458 = vmatpush2.bf16.xpose.msra.mxu0 0
        %459 = vmatprep.mubr.bf16.mxu0 0
        %460 = vmatmul.mubr.bf16.gmra.mxu0 %v362
        %v461 = vpop.f32.mrf.mxu0
        %v462 = vadd.f32 0.0, %v461
        %v463 = vpop.f32.mrf.mxu0
        %v464 = vpop.f32.mrf.mxu0
        %v465 = vpop.f32.mrf.mxu0
        %466 = vdwg.mxu0
        %v467 = vmax.f32 %v462, -1.0
        %v468 = vmin.f32 %v467, 1.0
        %s469 = sld [smem:[#allocation4]]
        %v470 = vmul.f32 %v468, 30.0
        %v471 = vstv %s469
        %v472 = vadd.f32 %v471, %v468
        %v473 = vmul.f32 %v470, %v472
        %v474 = vld [vmem:[%s352] sm:$0xff]
        %476 = vset.pattern.permute.xlu0 0
        %477 = vperm.xlu0 %476, %v474
        %v478 = vpop.permute.xlu0 %477
        %vm480 = vcmp.gt.f32.partialorder %v468, %v478
        %v481 = vsel %vm480, %v473, %v470
        %482 = vst [vmem:[%s343] sm:$0xff] %v481
        %s483 = smul.u32 %s35, 4
        %s484 = sadd.s32 %s483, %s36
        %s485 = sld [smem:[#allocation3 + %s484]]
        %p486 = scmp.gt.s32.totalorder %s485, 0
        // Predicated region
        $region49: #{tpu_custom_call.1} parent=43 // pred_check
          %p487 = pneg %p486
        $region50: #{tpu_custom_call.1} parent=43 // pred_check_branch
          %489 = sbr.rel (%p487) target = $region52
        $region51: #{tpu_custom_call.1} parent=43 // pred_region
          %v490 = vlaneseq
          %v491 = vand.u32 %v490, 127
          %s492 = smul.u32 %s36, 128
          %v493 = vstv %s492
          %v494 = vadd.s32 %v491, %v493
          %v495 = vld [vmem:[%s360] sm:$0xff]
          %496 = vset.pattern.permute.xlu0 0
          %497 = vperm.xlu0 %496, %v495
          %v498 = vpop.permute.xlu0 %497
          %vm499 = vcmp.eq.s32.totalorder %v494, %v498
          %v500 = vld [vmem:[%s356] sm:$0xff]
          %v501 = vld [vmem:[%s343] sm:$0xff]
          %503 = vset.pattern.permute.xlu0 0
          %504 = vperm.xlu0 %503, %v500
          %v505 = vpop.permute.xlu0 %504
          %v507 = vsel %vm499, %v505, %v501
          %508 = vst [vmem:[%s343] sm:$0xff] %v507
        $region52: #{tpu_custom_call.1} parent=43 // pred_fallthru
          _
        %s509 = sand.u32 %s204, 1
        %s510 = scalar_lea.sflag [#allocation7], %s509
        %s511 = sand.u32 %s204, 1
        %s512 = smul.addr %s511, 8
        %s513 = scalar_lea.vmem [#allocation8], %s512
        // Predicated region
        $region53: #{tpu_custom_call.1} parent=43 // pred_check
          %p514 = pneg %p214
        $region54: #{tpu_custom_call.1} parent=43 // pred_check_branch
          %516 = sbr.rel (%p514) target = $region56
        $region55: #{tpu_custom_call.1} parent=43 // pred_region
          %s518 = ssub.s32 128, 128
          %519 = vsyncadd %s510, %s518
          %s520 = smul.addr %s35, 4
          %s521 = sadd.s32 %s36, %s520
          %s522 = smul.addr %s521, 128
          %s523 = scalar_lea.hbm %s7, %s522
          %s525 = sshll.u32 %s513, 4
          %s526 = int_to_ptr.vmem [resolvable:$true] %s525
          %528 = dma.vmem_to_hbm [thread:$0]  %s526, 128, %s523, %s510
        $region56: #{tpu_custom_call.1} parent=43 // pred_fallthru
          _
      $region44: #{tpu_custom_call.1} parent=5 // pred_fallthru
        _
      %p529 = scmp.le.s32.totalorder 2, %s26
      // Predicated region
      $region57: #{tpu_custom_call.1} parent=5 // pred_check
        %p530 = pneg %p529
      $region58: #{tpu_custom_call.1} parent=5 // pred_check_branch
        %532 = sbr.rel (%p530) target = $region60
      $region59: #{tpu_custom_call.1} parent=5 // pred_region
        %s533 = ssub.s32 %s26, 2
        // Predicated region
        $region61: #{tpu_custom_call.1} parent=59 // pred_check
          %p534 = pneg %p220
        $region62: #{tpu_custom_call.1} parent=59 // pred_check_branch
          %536 = sbr.rel (%p534) target = $region64
        $region63: #{tpu_custom_call.1} parent=59 // pred_region
          %s537 = sand.u32 %s205, 1
          %s538 = scalar_lea.sflag [#allocation7], %s537
          %s539 = sand.u32 %s205, 1
          %s540 = smul.addr %s539, 8
          %s541 = scalar_lea.vmem [#allocation8], %s540
          %542 = dma.done %s538, 128
        $region64: #{tpu_custom_call.1} parent=59 // pred_fallthru
          _
      $region60: #{tpu_custom_call.1} parent=5 // pred_fallthru
        _
    $region6: #{tpu_custom_call.1} parent=1 // loop_footer
      %s30 = sadd.s32 1, %s26
    $region7: #{tpu_custom_call.1} parent=1 // loop_footer_branch
      %25 = sbr.rel target = $region3
    $region8: #{tpu_custom_call.1} parent=1 // loop_exit
      _
    %543 = vsyncpa [#allocation6], 1
    %s544 = scalar_lea.sflag [#allocation6], 1
    %545 = vsyncpa %s544, 1
    %546 = vsyncpa [#allocation7], 1
    %s547 = scalar_lea.sflag [#allocation7], 1
    %548 = vsyncpa %s547, 1

</llo_original>
